<compile_context>
chip_gen: v6e
topology: v6e:2x2x1
jax: 0.10.0
libtpu: 0.0.40
codegen_flags: <defaults>
</compile_context>

<pallas_src>
import functools

import jax
import jax.numpy as jnp
from jax.experimental import pallas as pl
from jax.experimental.pallas import tpu as pltpu


def _augment_kernel(fparams_ref, img_ref, mask_ref, out_ref, *, n_views):
    """One (batch, view) image per grid step; img_ref/out_ref are (C, H, W).

    fparams_ref (SMEM, 1-D f32), laid out per batch element b (stride 2 + N):
        [brightness_b, contrast_b, gamma_b0, ..., gamma_b(N-1)]
    mask_ref: (H, W) f32 shared zero-rectangle mask; constant index_map so it
        is DMA'd once and stays resident across grid steps.
    """
    b = pl.program_id(0)
    n = pl.program_id(1)
    base = b * (2 + n_views)
    brightness = fparams_ref[base + 0]
    contrast = fparams_ref[base + 1]
    gamma = fparams_ref[base + 2 + n]

    v = img_ref[...].astype(jnp.float32)                     # (C, H, W)

    # --- ColorJitter: brightness ---
    v = jnp.clip(v * brightness, 0.0, 1.0)

    # --- ColorJitter: contrast (blend against grayscale mean, ITU-R 601-2) ---
    gray = 0.299 * v[0] + 0.587 * v[1] + 0.114 * v[2]        # (H, W)
    gmean = jnp.mean(gray, keepdims=True)                    # (1, 1)
    v = jnp.clip(contrast * v + (1.0 - contrast) * gmean, 0.0, 1.0)

    # --- RandomGamma with clip_image=True (exp/log run on the EUP slot).
    # exp(.) >= 0 always, so only the upper clip is needed; keep the log guard.
    v = jnp.minimum(jnp.exp(gamma * jnp.log(jnp.maximum(v, 1e-30))), 1.0)

    # --- random_image_mask: zero rectangle on the reference view (n == 0) ---
    @pl.when(n == 0)
    def _():
        out_ref[...] = (v * mask_ref[...]).astype(out_ref.dtype)

    @pl.when(n != 0)
    def _():
        out_ref[...] = v.astype(out_ref.dtype)


def augmentor_forward(imgs, fparams, iparams):
    """imgs: [B, N, C, H, W] float in [0, 1] (f32 or bf16);
    fparams: [B*(2+N)] f32, per batch (brightness, contrast, gamma_0..gamma_{N-1});
    iparams: [2] i32 (y0, x0) of the view-0 (H//4, W//4) zero rectangle.
    Returns (aug_imgs [B, N, C, H, W] same dtype as imgs,
             filter_mask [B, C, H, W] float32)."""
    B, N, C, H, W = imgs.shape
    assert C == 3, "ColorJitter grayscale path assumes 3-channel RGB"

    # Shared view-0 zero rectangle, built once in the wrapper with plain JAX;
    # the kernel only multiplies by it (no in-kernel iota / integer divide).
    fh, fw = H // 4, W // 4
    y0 = iparams[0]
    x0 = iparams[1]
    row = jnp.arange(H, dtype=jnp.int32)[:, None]
    col = jnp.arange(W, dtype=jnp.int32)[None, :]
    inside = (row >= y0) & (row < y0 + fh) & (col >= x0) & (col < x0 + fw)
    mask2d = jnp.where(inside, 0.0, 1.0).astype(jnp.float32)       # (H, W)

    kernel = functools.partial(_augment_kernel, n_views=N)

    elems = B * N * C * H * W
    itemsize = jnp.dtype(imgs.dtype).itemsize
    cost = pl.CostEstimate(
        flops=12 * elems,
        transcendentals=2 * elems,
        bytes_accessed=2 * elems * itemsize + H * W * 4,
    )

    aug = pl.pallas_call(
        kernel,
        out_shape=jax.ShapeDtypeStruct((B, N, C, H, W), imgs.dtype),
        grid_spec=pltpu.PrefetchScalarGridSpec(
            num_scalar_prefetch=1,
            grid=(B, N),
            in_specs=[
                # One (C, H, W) view per step: sublane dim = H, lane dim = W.
                pl.BlockSpec(
                    (pl.Squeezed(), pl.Squeezed(), C, H, W),
                    lambda b, n, fp: (b, n, 0, 0, 0),
                ),
                # Shared mask, constant block index -> fetched once.
                pl.BlockSpec((H, W), lambda b, n, fp: (0, 0)),
            ],
            out_specs=pl.BlockSpec(
                (pl.Squeezed(), pl.Squeezed(), C, H, W),
                lambda b, n, fp: (b, n, 0, 0, 0),
            ),
        ),
        compiler_params=pltpu.CompilerParams(
            # Both axes independent: shard (b, n) steps across v7x's 2 TCs.
            dimension_semantics=("parallel", "parallel"),
        ),
        cost_estimate=cost,
    )(fparams, imgs, mask2d)

    # filter_mask kept at the reference shape [B, C, H, W] (ones_like(ref_img)
    # with one shared rectangle).  If downstream accepts it, returning mask2d
    # (or mask2d[None, None]) instead saves the redundant broadcast HBM write.
    filter_mask = jnp.broadcast_to(mask2d[None, None], (B, C, H, W))
    return aug, filter_mask


if __name__ == "__main__":
    B, N, C, H, W = 2, 3, 3, 16, 16

    key = jax.random.PRNGKey(0)
    k_img, k_b, k_c, k_g, k_y, k_x = jax.random.split(key, 6)

    # Input "PIL-equivalent" images already in [0, 1] float32, NCHW per view.
    imgs = jax.random.uniform(k_img, (B, N, C, H, W), dtype=jnp.float32)

    # ColorJitter params: one (brightness, contrast) per batch element.
    brightness = jax.random.uniform(k_b, (B,), minval=0.5, maxval=1.5)
    contrast = jax.random.uniform(k_c, (B,), minval=0.5, maxval=1.5)
    # RandomGamma: one gamma per image.
    gamma = jax.random.uniform(k_g, (B, N), minval=0.7, maxval=2.0)

    # Flat 1-D SMEM layout per batch element: [bright, contrast, gamma_0..N-1].
    fparams = jnp.concatenate(
        [brightness[:, None], contrast[:, None], gamma], axis=1
    ).reshape(-1).astype(jnp.float32)

    # random_image_mask rectangle (single draw, shared across the batch,
    # matching the reference implementation).
    fh, fw = H // 4, W // 4
    y0 = jax.random.randint(k_y, (), 0, H - fh, dtype=jnp.int32)
    x0 = jax.random.randint(k_x, (), 0, W - fw, dtype=jnp.int32)
    iparams = jnp.stack([y0, x0]).astype(jnp.int32)

    out_imgs, out_mask = augmentor_forward(imgs, fparams, iparams)
    jax.block_until_ready((out_imgs, out_mask))

    assert out_imgs.shape == (B, N, C, H, W)
    assert out_mask.shape == (B, C, H, W)
    print("KERNEL_OK")
</pallas_src>

<mosaic_0001>
module attributes {stable_mosaic.version = 11 : i64} {
  func.func @_augment_kernel(%arg0: i32, %arg1: i32, %arg2: memref<10xf32, #tpu.memory_space<smem>>, %arg3: memref<1x1x3x16x16xf32, #tpu.memory_space<vmem>>, %arg4: memref<16x16xf32, #tpu.memory_space<vmem>>, %arg5: memref<1x1x3x16x16xf32, #tpu.memory_space<vmem>>) attributes {dimension_semantics = [#tpu.dimension_semantics<parallel>, #tpu.dimension_semantics<parallel>], iteration_bounds = array<i64: 2, 3>, scalar_prefetch = 1 : i64, scratch_operands = 0 : i64, tpu.core_type = #tpu.core_type<tc>, window_params = [{transform_indices = @transform_0, window_bounds = array<i64: 1, 1, 3, 16, 16>}, {pipeline_mode = #tpu.pipeline_mode<synchronous>, transform_indices = @transform_1, window_bounds = array<i64: 16, 16>}, {transform_indices = @transform_2, window_bounds = array<i64: 1, 1, 3, 16, 16>}]} {
    %c5_i32 = arith.constant 5 : i32
    %0 = arith.muli %arg0, %c5_i32 : i32
    %c0_i32 = arith.constant 0 : i32
    %1 = arith.addi %0, %c0_i32 : i32
    %2 = arith.index_cast %1 : i32 to index
    %3 = memref.load %arg2[%2] : memref<10xf32, #tpu.memory_space<smem>>
    %c1_i32 = arith.constant 1 : i32
    %4 = arith.addi %0, %c1_i32 : i32
    %5 = arith.index_cast %4 : i32 to index
    %6 = memref.load %arg2[%5] : memref<10xf32, #tpu.memory_space<smem>>
    %c2_i32 = arith.constant 2 : i32
    %7 = arith.addi %0, %c2_i32 : i32
    %8 = arith.addi %7, %arg1 : i32
    %9 = arith.index_cast %8 : i32 to index
    %10 = memref.load %arg2[%9] : memref<10xf32, #tpu.memory_space<smem>>
    %c0 = arith.constant 0 : index
    %c0_0 = arith.constant 0 : index
    %c0_1 = arith.constant 0 : index
    %c0_2 = arith.constant 0 : index
    %c0_3 = arith.constant 0 : index
    %11 = vector.load %arg3[%c0, %c0_0, %c0_1, %c0_2, %c0_3] : memref<1x1x3x16x16xf32, #tpu.memory_space<vmem>>, vector<1x1x3x16x16xf32>
    %12 = vector.shape_cast %11 : vector<1x1x3x16x16xf32> to vector<3x16x16xf32>
    %13 = vector.broadcast %3 : f32 to vector<3x16x16xf32>
    %14 = arith.mulf %12, %13 : vector<3x16x16xf32>
    %cst = arith.constant 0.000000e+00 : f32
    %cst_4 = arith.constant 1.000000e+00 : f32
    %15 = vector.broadcast %cst : f32 to vector<3x16x16xf32>
    %16 = arith.maximumf %15, %14 : vector<3x16x16xf32>
    %17 = vector.broadcast %cst_4 : f32 to vector<3x16x16xf32>
    %18 = arith.minimumf %17, %16 : vector<3x16x16xf32>
    %19 = vector.extract_strided_slice %18 {offsets = [0, 0, 0], sizes = [1, 16, 16], strides = [1, 1, 1]} : vector<3x16x16xf32> to vector<1x16x16xf32>
    %20 = vector.shape_cast %19 : vector<1x16x16xf32> to vector<16x16xf32>
    %cst_5 = arith.constant 2.990000e-01 : f32
    %21 = vector.broadcast %cst_5 : f32 to vector<16x16xf32>
    %22 = arith.mulf %21, %20 : vector<16x16xf32>
    %23 = vector.extract_strided_slice %18 {offsets = [1, 0, 0], sizes = [1, 16, 16], strides = [1, 1, 1]} : vector<3x16x16xf32> to vector<1x16x16xf32>
    %24 = vector.shape_cast %23 : vector<1x16x16xf32> to vector<16x16xf32>
    %cst_6 = arith.constant 5.870000e-01 : f32
    %25 = vector.broadcast %cst_6 : f32 to vector<16x16xf32>
    %26 = arith.mulf %25, %24 : vector<16x16xf32>
    %27 = arith.addf %22, %26 : vector<16x16xf32>
    %28 = vector.extract_strided_slice %18 {offsets = [2, 0, 0], sizes = [1, 16, 16], strides = [1, 1, 1]} : vector<3x16x16xf32> to vector<1x16x16xf32>
    %29 = vector.shape_cast %28 : vector<1x16x16xf32> to vector<16x16xf32>
    %cst_7 = arith.constant 1.140000e-01 : f32
    %30 = vector.broadcast %cst_7 : f32 to vector<16x16xf32>
    %31 = arith.mulf %30, %29 : vector<16x16xf32>
    %32 = arith.addf %27, %31 : vector<16x16xf32>
    %33 = vector.shape_cast %32 : vector<16x16xf32> to vector<1x16x16xf32>
    %cst_8 = arith.constant dense<0.000000e+00> : vector<1xf32>
    %34 = vector.multi_reduction <add>, %33, %cst_8 [1, 2] : vector<1x16x16xf32> to vector<1xf32>
    %35 = vector.shape_cast %34 : vector<1xf32> to vector<1x1x1xf32>
    %36 = vector.extract %35[0, 0, 0] : f32 from vector<1x1x1xf32>
    %37 = vector.broadcast %36 : f32 to vector<1x1xf32>
    %cst_9 = arith.constant 2.560000e+02 : f32
    %38 = vector.broadcast %cst_9 : f32 to vector<1x1xf32>
    %39 = arith.divf %37, %38 : vector<1x1xf32>
    %40 = vector.broadcast %6 : f32 to vector<3x16x16xf32>
    %41 = arith.mulf %40, %18 : vector<3x16x16xf32>
    %cst_10 = arith.constant 1.000000e+00 : f32
    %42 = arith.subf %cst_10, %6 : f32
    %43 = vector.broadcast %42 : f32 to vector<1x1xf32>
    %44 = arith.mulf %43, %39 : vector<1x1xf32>
    %45 = vector.shape_cast %44 : vector<1x1xf32> to vector<1x1x1xf32>
    %46 = vector.broadcast %45 : vector<1x1x1xf32> to vector<3x16x16xf32>
    %47 = arith.addf %41, %46 : vector<3x16x16xf32>
    %cst_11 = arith.constant 0.000000e+00 : f32
    %cst_12 = arith.constant 1.000000e+00 : f32
    %48 = vector.broadcast %cst_11 : f32 to vector<3x16x16xf32>
    %49 = arith.maximumf %48, %47 : vector<3x16x16xf32>
    %50 = vector.broadcast %cst_12 : f32 to vector<3x16x16xf32>
    %51 = arith.minimumf %50, %49 : vector<3x16x16xf32>
    %cst_13 = arith.constant 1.000000e-30 : f32
    %52 = vector.broadcast %cst_13 : f32 to vector<3x16x16xf32>
    %53 = arith.maximumf %51, %52 : vector<3x16x16xf32>
    %54 = math.log %53 : vector<3x16x16xf32>
    %55 = vector.broadcast %10 : f32 to vector<3x16x16xf32>
    %56 = arith.mulf %55, %54 : vector<3x16x16xf32>
    %57 = math.exp %56 : vector<3x16x16xf32>
    %cst_14 = arith.constant 1.000000e+00 : f32
    %58 = vector.broadcast %cst_14 : f32 to vector<3x16x16xf32>
    %59 = arith.minimumf %57, %58 : vector<3x16x16xf32>
    %c0_i32_15 = arith.constant 0 : i32
    %60 = arith.cmpi eq, %arg1, %c0_i32_15 : i32
    %61 = arith.extui %60 : i1 to i32
    %c0_i32_16 = arith.constant 0 : i32
    %62 = arith.cmpi ne, %61, %c0_i32_16 : i32
    scf.if %62 {
      %c0_19 = arith.constant 0 : index
      %c0_20 = arith.constant 0 : index
      %66 = vector.load %arg4[%c0_19, %c0_20] : memref<16x16xf32, #tpu.memory_space<vmem>>, vector<16x16xf32>
      %67 = vector.shape_cast %66 : vector<16x16xf32> to vector<1x16x16xf32>
      %68 = vector.broadcast %67 : vector<1x16x16xf32> to vector<3x16x16xf32>
      %69 = arith.mulf %59, %68 : vector<3x16x16xf32>
      %c0_21 = arith.constant 0 : index
      %c0_22 = arith.constant 0 : index
      %c0_23 = arith.constant 0 : index
      %c0_24 = arith.constant 0 : index
      %c0_25 = arith.constant 0 : index
      %70 = vector.load %arg5[%c0_21, %c0_22, %c0_23, %c0_24, %c0_25] : memref<1x1x3x16x16xf32, #tpu.memory_space<vmem>>, vector<1x1x3x16x16xf32>
      %71 = vector.shape_cast %70 : vector<1x1x3x16x16xf32> to vector<3x16x16xf32>
      %72 = vector.shape_cast %69 : vector<3x16x16xf32> to vector<1x1x3x16x16xf32>
      tpu.vector_store %arg5[%c0_21, %c0_22, %c0_23, %c0_24, %c0_25], %72 {strides = array<i32>} : memref<1x1x3x16x16xf32, #tpu.memory_space<vmem>>, vector<1x1x3x16x16xf32>,
    } else {
    }
    %c0_i32_17 = arith.constant 0 : i32
    %63 = arith.cmpi ne, %arg1, %c0_i32_17 : i32
    %64 = arith.extui %63 : i1 to i32
    %c0_i32_18 = arith.constant 0 : i32
    %65 = arith.cmpi ne, %64, %c0_i32_18 : i32
    scf.if %65 {
      %c0_19 = arith.constant 0 : index
      %c0_20 = arith.constant 0 : index
      %c0_21 = arith.constant 0 : index
      %c0_22 = arith.constant 0 : index
      %c0_23 = arith.constant 0 : index
      %66 = vector.load %arg5[%c0_19, %c0_20, %c0_21, %c0_22, %c0_23] : memref<1x1x3x16x16xf32, #tpu.memory_space<vmem>>, vector<1x1x3x16x16xf32>
      %67 = vector.shape_cast %66 : vector<1x1x3x16x16xf32> to vector<3x16x16xf32>
      %68 = vector.shape_cast %59 : vector<3x16x16xf32> to vector<1x1x3x16x16xf32>
      tpu.vector_store %arg5[%c0_19, %c0_20, %c0_21, %c0_22, %c0_23], %68 {strides = array<i32>} : memref<1x1x3x16x16xf32, #tpu.memory_space<vmem>>, vector<1x1x3x16x16xf32>,
    } else {
    }
    return
  }
  func.func @transform_0(%arg0: i32, %arg1: i32, %arg2: memref<10xf32, #tpu.memory_space<smem>>) -> (i32, i32, i32, i32, i32) {
    %c0_i32 = arith.constant 0 : i32
    %c0_i32_0 = arith.constant 0 : i32
    %c0_i32_1 = arith.constant 0 : i32
    %c0_i32_2 = arith.constant 0 : i32
    return %arg0, %arg1, %c0_i32, %c0_i32_0, %c0_i32_1 : i32, i32, i32, i32, i32
  }
  func.func @transform_1(%arg0: i32, %arg1: i32, %arg2: memref<10xf32, #tpu.memory_space<smem>>) -> (i32, i32) {
    %c0_i32 = arith.constant 0 : i32
    %c0_i32_0 = arith.constant 0 : i32
    %c0_i32_1 = arith.constant 0 : i32
    return %c0_i32, %c0_i32_0 : i32, i32
  }
  func.func @transform_2(%arg0: i32, %arg1: i32, %arg2: memref<10xf32, #tpu.memory_space<smem>>) -> (i32, i32, i32, i32, i32) {
    %c0_i32 = arith.constant 0 : i32
    %c0_i32_0 = arith.constant 0 : i32
    %c0_i32_1 = arith.constant 0 : i32
    %c0_i32_2 = arith.constant 0 : i32
    return %arg0, %arg1, %c0_i32, %c0_i32_0, %c0_i32_1 : i32, i32, i32, i32, i32
  }
}

</mosaic_0001>

<llo_original>
// kernel: tpu_custom_call.1
$region0: #{tpu_custom_call.1}
  #allocation0 [shape = 'u32[]', space=smem, size = 0x4, offset = 0x4, fixed_abs, tag = 'smem constant byte address 0x4 - core index']
  #allocation1 [shape = 'u32[144,128]{1,0:T(1,128)}', space=vmem, size = 0x12000, scoped, tag = 'internal scratch']
  #allocation2 [shape = 's32[1]{0}', space=sflag, size = 0x4, scoped, tag = 'scoped memory for tpu_custom_call.1']
  #allocation3 [shape = 'u8[512]{0}', space=smem, size = 0x200, scoped, tag = 'prefetched SMEM operand 0']
  %s0 = inlined_call_operand.hbm [shape: f32[10], index: 0, kind: input, shape index: {}]
  %s1 = inlined_call_operand.hbm [shape: f32[2,3,3,16,16], index: 1, kind: input, shape index: {}]
  %s2 = inlined_call_operand.hbm [shape: f32[16,16], index: 2, kind: input, shape index: {}]
  %s3 = inlined_call_operand.hbm [shape: f32[2,3,3,16,16], index: 3, kind: output, shape index: {}]
  %s4 = sld [smem:[#allocation0]]
  $region57: #{tpu_custom_call.1} parent=0
    _
  %s6 = ssub.s32 1, %s4
  %s7 = scalar_select 0, %s6, %s4
  %9 = dma.hbm_to_smem %s0, 16, [#allocation3], [#allocation2]
  %10 = dma.done [#allocation2], 16
  %11 = sfence
  $region1: #{tpu_custom_call.1} parent=0
    #allocation4 [shape = 'u8[49152]{0}', space=vmem, size = 0xc000, scoped, tag = 'input window, operand 1']
    #allocation5 [shape = 's32[2]{0}', space=sflag, size = 0x8, scoped, tag = 'scoped memory for tpu_custom_call.1']
    #allocation6 [shape = 's32[2]{0}', space=sflag, size = 0x8, scoped, tag = 'scoped memory for tpu_custom_call.1']
    #allocation7 [shape = 'u8[8192]{0}', space=vmem, size = 0x2000, scoped, tag = 'input window, operand 2, single buffered']
    #allocation8 [shape = 's32[1]{0}', space=sflag, size = 0x4, scoped, tag = 'scoped memory for tpu_custom_call.1']
    #allocation9 [shape = 'u8[49152]{0}', space=vmem, size = 0xc000, scoped, tag = 'output window, operand 0']
    %12 = vsyncpa [#allocation5], 0
    %s13 = scalar_lea.sflag [#allocation5], 1
    %14 = vsyncpa %s13, 0
    %15 = vsyncpa [#allocation8], 0
    %16 = vsyncpa [#allocation6], 0
    %s17 = scalar_lea.sflag [#allocation6], 1
    %18 = vsyncpa %s17, 0
    loop: start=0, step=1, limit=8
    $region2: #{tpu_custom_call.1} parent=1 // loop_pre_header
      _
    $region3: #{tpu_custom_call.1} parent=1 // loop_header
      %s20 = sphi 0, %s24
      %p21 = scmp.ge.s32.totalorder %s20, 8
      %s27 = sphi 0, %s39
      %s28 = sphi 0, %s35
      %s29 = sphi 0, %s27
      %s30 = sphi 0, %s28
      %s31 = sphi 0, %s29
      %s32 = sphi 0, %s30
      %s44 = sphi 0, %s46
      %s47 = sphi 0, %s44
      %s48 = sphi 0, %s47
      %s64 = sphi 0, %s48
      %s68 = sphi 0, %s68
      %s70 = sphi 0, %s68
      %s71 = sphi 0, %s70
      %s85 = sphi 0, %s71
      %s93 = sphi 0, %s95
      %s96 = sphi 0, %s93
      %s97 = sphi 0, %s96
      %s113 = sphi 0, %s97
    $region4: #{tpu_custom_call.1} parent=1 // loop_header_branch
      %23 = sbr.rel (%p21) target = $region8
    $region5: #{tpu_custom_call.1} parent=1 // loop_body
      %s25 = ssub.s32 %s20, 1
      %s26 = ssub.s32 %s20, 2
      %s33 = sadd.s32 1, %s28
      %p34 = scmp.ge.s32.totalorder %s33, 3
      %s35 = scalar_select %p34, 0, %s33
      %s36 = sadd.s32 1, %s27
      %s37 = scalar_select %p34, %s36, %s27
      %p38 = scmp.ge.s32.totalorder %s37, 2
      %s39 = scalar_select %p38, 0, %s37
      %s40 = ssub.s32 %s27, %s39
      %s41 = ssub.s32 %s28, %s35
      %s42 = sor.u32 %s40, %s41
      %p43 = scmp.eq.s32.totalorder %s42, 0
      %s45 = sadd.s32 %s44, 1
      %s46 = scalar_select %p43, %s44, %s45
      %p49 = pneg %p43
      %p50 = scmp.eq.s32.totalorder %s20, 5
      %p51 = por %p49, %p50
      %p52 = scmp.ne.s32.totalorder %s44, %s47
      %p53 = scmp.eq.s32.totalorder %s20, 0
      %p54 = por %p52, %p53
      %p55 = scmp.ne.s32.totalorder %s44, %s47
      %p56 = scmp.eq.s32.totalorder %s25, 5
      %p57 = por %p55, %p56
      %p58 = scmp.ne.s32.totalorder %s47, %s48
      %p59 = scmp.eq.s32.totalorder %s25, 0
      %p60 = por %p58, %p59
      %p61 = scmp.ne.s32.totalorder %s47, %s48
      %p62 = scmp.eq.s32.totalorder %s26, 5
      %p63 = por %p61, %p62
      %p65 = scmp.ne.s32.totalorder %s48, %s64
      %p66 = scmp.eq.s32.totalorder %s26, 0
      %p67 = por %p65, %p66
      %s69 = sadd.s32 %s68, 1
      %p72 = scmp.eq.s32.totalorder %s20, 5
      %p73 = scmp.ne.s32.totalorder %s68, %s70
      %p74 = scmp.eq.s32.totalorder %s20, 0
      %p75 = por %p73, %p74
      %p76 = scmp.ne.s32.totalorder %s68, %s70
      %p77 = scmp.eq.s32.totalorder %s25, 5
      %p78 = por %p76, %p77
      %p79 = scmp.ne.s32.totalorder %s70, %s71
      %p80 = scmp.eq.s32.totalorder %s25, 0
      %p81 = por %p79, %p80
      %p82 = scmp.ne.s32.totalorder %s70, %s71
      %p83 = scmp.eq.s32.totalorder %s26, 5
      %p84 = por %p82, %p83
      %p86 = scmp.ne.s32.totalorder %s71, %s85
      %p87 = scmp.eq.s32.totalorder %s26, 0
      %p88 = por %p86, %p87
      %s89 = ssub.s32 %s27, %s39
      %s90 = ssub.s32 %s28, %s35
      %s91 = sor.u32 %s89, %s90
      %p92 = scmp.eq.s32.totalorder %s91, 0
      %s94 = sadd.s32 %s93, 1
      %s95 = scalar_select %p92, %s93, %s94
      %p98 = pneg %p92
      %p99 = scmp.eq.s32.totalorder %s20, 5
      %p100 = por %p98, %p99
      %p101 = scmp.ne.s32.totalorder %s93, %s96
      %p102 = scmp.eq.s32.totalorder %s20, 0
      %p103 = por %p101, %p102
      %p104 = scmp.ne.s32.totalorder %s93, %s96
      %p105 = scmp.eq.s32.totalorder %s25, 5
      %p106 = por %p104, %p105
      %p107 = scmp.ne.s32.totalorder %s96, %s97
      %p108 = scmp.eq.s32.totalorder %s25, 0
      %p109 = por %p107, %p108
      %p110 = scmp.ne.s32.totalorder %s96, %s97
      %p111 = scmp.eq.s32.totalorder %s26, 5
      %p112 = por %p110, %p111
      %p114 = scmp.ne.s32.totalorder %s97, %s113
      %p115 = scmp.eq.s32.totalorder %s26, 0
      %p116 = por %p114, %p115
      %p117 = scmp.le.s32.totalorder 1, %s20
      %p118 = scmp.lt.s32.totalorder %s20, 7
      %p119 = pnand %p117, %p118
      %p120 = pneg %p119
      // Predicated region
      $region9: #{tpu_custom_call.1} parent=5 // pred_check
        _
      $region10: #{tpu_custom_call.1} parent=5 // pred_check_branch
        %122 = sbr.rel (%p119) target = $region12
      $region11: #{tpu_custom_call.1} parent=5 // pred_region
        %s123 = ssub.s32 %s20, 1
        // Predicated region
        $region13: #{tpu_custom_call.1} parent=11 // pred_check
          %p124 = pneg %p81
        $region14: #{tpu_custom_call.1} parent=11 // pred_check_branch
          %126 = sbr.rel (%p124) target = $region16
        $region15: #{tpu_custom_call.1} parent=11 // pred_region
          %s128 = ssub.s32 256, 256
          %129 = vsyncadd [#allocation8], %s128
          %s130 = sshll.u32 [#allocation7], 4
          %s131 = int_to_ptr.vmem [resolvable:$true] %s130
          %136 = dma.hbm_to_vmem [thread:$0]  %s2, 256, %s131, [#allocation8], 128, 128, 8
        $region16: #{tpu_custom_call.1} parent=11 // pred_fallthru
          _
      $region12: #{tpu_custom_call.1} parent=5 // pred_fallthru
        _
      %p137 = scmp.lt.s32.totalorder %s20, 6
      // Predicated region
      $region17: #{tpu_custom_call.1} parent=5 // pred_check
        %p138 = pneg %p137
      $region18: #{tpu_custom_call.1} parent=5 // pred_check_branch
        %140 = sbr.rel (%p138) target = $region20
      $region19: #{tpu_custom_call.1} parent=5 // pred_region
        // Predicated region
        $region21: #{tpu_custom_call.1} parent=19 // pred_check
          %p141 = pneg %p54
        $region22: #{tpu_custom_call.1} parent=19 // pred_check_branch
          %143 = sbr.rel (%p141) target = $region24
        $region23: #{tpu_custom_call.1} parent=19 // pred_region
          %s144 = sand.u32 %s44, 1
          %s145 = scalar_lea.sflag [#allocation5], %s144
          %s146 = sand.u32 %s44, 1
          %s147 = smul.addr %s146, 48
          %s148 = scalar_lea.vmem [#allocation4], %s147
          %s150 = ssub.s32 768, 768
          %151 = vsyncadd %s145, %s150
          %s152 = smul.addr %s28, 6
          %s153 = smul.addr %s27, 18
          %s154 = sadd.s32 %s152, %s153
          %s155 = smul.addr %s154, 128
          %s156 = scalar_lea.hbm %s1, %s155
          %s157 = sshll.u32 %s148, 4
          %s158 = int_to_ptr.vmem [resolvable:$true] %s157
          %163 = dma.hbm_to_vmem [thread:$0]  %s156, 768, %s158, %s145, 128, 128, 8
        $region24: #{tpu_custom_call.1} parent=19 // pred_fallthru
          _
      $region20: #{tpu_custom_call.1} parent=5 // pred_fallthru
        _
      %p164 = scmp.le.s32.totalorder 1, %s20
      %p165 = scmp.lt.s32.totalorder %s20, 7
      %p166 = pnand %p164, %p165
      %p167 = pneg %p166
      // Predicated region
      $region25: #{tpu_custom_call.1} parent=5 // pred_check
        _
      $region26: #{tpu_custom_call.1} parent=5 // pred_check_branch
        %169 = sbr.rel (%p166) target = $region28
      $region27: #{tpu_custom_call.1} parent=5 // pred_region
        %s170 = ssub.s32 %s20, 1
        %s171 = sand.u32 %s47, 1
        %s172 = scalar_lea.sflag [#allocation5], %s171
        %s173 = sand.u32 %s47, 1
        %s174 = smul.addr %s173, 48
        %s175 = scalar_lea.vmem [#allocation4], %s174
        // Predicated region
        $region29: #{tpu_custom_call.1} parent=27 // pred_check
          %p176 = pneg %p60
        $region30: #{tpu_custom_call.1} parent=27 // pred_check_branch
          %178 = sbr.rel (%p176) target = $region32
        $region31: #{tpu_custom_call.1} parent=27 // pred_region
          %179 = dma.done %s172, 768
        $region32: #{tpu_custom_call.1} parent=27 // pred_fallthru
          _
        // Predicated region
        $region33: #{tpu_custom_call.1} parent=27 // pred_check
          %p180 = pneg %p81
        $region34: #{tpu_custom_call.1} parent=27 // pred_check_branch
          %182 = sbr.rel (%p180) target = $region36
        $region35: #{tpu_custom_call.1} parent=27 // pred_region
          %183 = dma.done [#allocation8], 256
        $region36: #{tpu_custom_call.1} parent=27 // pred_fallthru
          _
        %s184 = sand.u32 %s47, 1
        %s185 = scalar_lea.sflag [#allocation5], %s184
        %s186 = sand.u32 %s47, 1
        %s187 = smul.addr %s186, 48
        %s188 = scalar_lea.vmem [#allocation4], %s187
        %p189 = pneg %p60
        %p190 = pneg %p57
        %p191 = pneg %p81
        %p192 = pneg %p78
        %p193 = pneg %p109
        %p194 = pneg %p106
        %s195 = sand.u32 %s96, 1
        %s196 = scalar_lea.sflag [#allocation6], %s195
        %s197 = sand.u32 %s96, 1
        %s198 = smul.addr %s197, 48
        %s199 = scalar_lea.vmem [#allocation9], %s198
        %s200 = smul.u32 %s29, 5
        %s201 = sld [smem:[#allocation3 + %s200]]
        %s202 = sadd.s32 %s200, 1
        %s203 = sld [smem:[#allocation3 + %s202]]
        %s204 = sadd.s32 %s200, 2
        %s205 = sadd.s32 %s204, %s30
        %s206 = sld [smem:[#allocation3 + %s205]]
        %v207 = vld [vmem:[%s175] sm:$0xff]
        %v208 = vld [vmem:[%s175 + $0x8] sm:$0xff]
        %v209 = vld [vmem:[%s175 + $0x10] sm:$0xff]
        %v210 = vld [vmem:[%s175 + $0x18] sm:$0xff]
        %v211 = vld [vmem:[%s175 + $0x20] sm:$0xff]
        %v212 = vld [vmem:[%s175 + $0x28] sm:$0xff]
        %v213 = vstv %s201
        %v214 = vmul.f32 %v207, %v213
        %v215 = vmul.f32 %v208, %v213
        %v216 = vmul.f32 %v209, %v213
        %v217 = vmul.f32 %v210, %v213
        %v218 = vmul.f32 %v211, %v213
        %v219 = vmul.f32 %v212, %v213
        %v220 = vmax.f32 %v214, 0.0
        %v221 = vmax.f32 %v215, 0.0
        %v222 = vmax.f32 %v216, 0.0
        %v223 = vmax.f32 %v217, 0.0
        %v224 = vmax.f32 %v218, 0.0
        %v225 = vmax.f32 %v219, 0.0
        %v226 = vmin.f32 %v220, 1.0
        %v227 = vmin.f32 %v221, 1.0
        %v228 = vmin.f32 %v222, 1.0
        %v229 = vmin.f32 %v223, 1.0
        %v230 = vmin.f32 %v224, 1.0
        %v231 = vmin.f32 %v225, 1.0
        %v232 = vmul.f32 %v226, 0.299
        %v233 = vmul.f32 %v227, 0.299
        %v234 = vmul.f32 %v228, 0.587
        %v235 = vmul.f32 %v229, 0.587
        %v236 = vadd.f32 %v232, %v234
        %v237 = vadd.f32 %v233, %v235
        %v238 = vmul.f32 %v230, 0.114
        %v239 = vmul.f32 %v231, 0.114
        %v240 = vadd.f32 %v236, %v238
        %v241 = vadd.f32 %v237, %v239
        %vm242 = vcmask 130048
        %v243 = vsel %vm242, %v240, 0.0
        %v244 = vsel %vm242, %v241, 0.0
        %v245 = vadd.f32 %v243, %v244
        %246 = vadd.xlane.f32.xlu0 %v245
        %v247 = vpop.xlane.xlu0 %246
        %v248 = vrot.slane %v247, 4
        %v249 = vadd.f32 %v247, %v248
        %v250 = vrot.slane %v249, 2
        %v251 = vadd.f32 %v249, %v250
        %v252 = vrot.slane %v251, 1
        %v253 = vadd.f32 %v251, %v252
        %s254 = vtos %v253
        %v255 = vstv %s254
        %v256 = vrcp.pop 256.0
        %v257 = vmul.f32 %v255, %v256
        %v258 = vstv %s203
        %v259 = vmul.f32 %v258, %v226
        %v260 = vmul.f32 %v258, %v227
        %v261 = vmul.f32 %v258, %v228
        %v262 = vmul.f32 %v258, %v229
        %v263 = vmul.f32 %v258, %v230
        %v264 = vmul.f32 %v258, %v231
        %s265 = ssub.f32 1.0, %s203
        %v266 = vstv %s265
        %v267 = vmul.f32 %v266, %v257
        %v268 = vadd.f32 %v259, %v267
        %v269 = vadd.f32 %v260, %v267
        %v270 = vadd.f32 %v261, %v267
        %v271 = vadd.f32 %v262, %v267
        %v272 = vadd.f32 %v263, %v267
        %v273 = vadd.f32 %v264, %v267
        %v274 = vmax.f32 %v268, 0.0
        %v275 = vmax.f32 %v269, 0.0
        %v276 = vmax.f32 %v270, 0.0
        %v277 = vmax.f32 %v271, 0.0
        %v278 = vmax.f32 %v272, 0.0
        %v279 = vmax.f32 %v273, 0.0
        %v280 = vmin.f32 %v274, 1.0
        %v281 = vmin.f32 %v275, 1.0
        %v282 = vmin.f32 %v276, 1.0
        %v283 = vmin.f32 %v277, 1.0
        %v284 = vmin.f32 %v278, 1.0
        %v285 = vmin.f32 %v279, 1.0
        %v286 = vmax.f32 %v280, 1e-30
        %v287 = vmax.f32 %v281, 1e-30
        %v288 = vmax.f32 %v282, 1e-30
        %v289 = vmax.f32 %v283, 1e-30
        %v290 = vmax.f32 %v284, 1e-30
        %v291 = vmax.f32 %v285, 1e-30
        %v292 = vlog2.pop %v286
        %v293 = vmul.f32 %v292, 0.6931472
        %v294 = vlog2.pop %v287
        %v295 = vmul.f32 %v294, 0.6931472
        %v296 = vlog2.pop %v288
        %v297 = vmul.f32 %v296, 0.6931472
        %v298 = vlog2.pop %v289
        %v299 = vmul.f32 %v298, 0.6931472
        %v300 = vlog2.pop %v290
        %v301 = vmul.f32 %v300, 0.6931472
        %v302 = vlog2.pop %v291
        %v303 = vmul.f32 %v302, 0.6931472
        %v304 = vstv %s206
        %v305 = vmul.f32 %v304, %v293
        %v306 = vmul.f32 %v304, %v295
        %v307 = vmul.f32 %v304, %v297
        %v308 = vmul.f32 %v304, %v299
        %v309 = vmul.f32 %v304, %v301
        %v310 = vmul.f32 %v304, %v303
        %v311 = vmul.f32 %v305, 1.442695
        %v312 = vpow.pop %v311
        %v313 = vmul.f32 %v306, 1.442695
        %v314 = vpow.pop %v313
        %v315 = vmul.f32 %v307, 1.442695
        %v316 = vpow.pop %v315
        %v317 = vmul.f32 %v308, 1.442695
        %v318 = vpow.pop %v317
        %v319 = vmul.f32 %v309, 1.442695
        %v320 = vpow.pop %v319
        %v321 = vmul.f32 %v310, 1.442695
        %v322 = vpow.pop %v321
        %v323 = vmin.f32 %v312, 1.0
        %v324 = vmin.f32 %v314, 1.0
        %v325 = vmin.f32 %v316, 1.0
        %v326 = vmin.f32 %v318, 1.0
        %v327 = vmin.f32 %v320, 1.0
        %v328 = vmin.f32 %v322, 1.0
        %p329 = scmp.eq.s32.totalorder %s30, 0
        // Predicated region
        $region37: #{tpu_custom_call.1} parent=27 // pred_check
          %p330 = pneg %p329
        $region38: #{tpu_custom_call.1} parent=27 // pred_check_branch
          %332 = sbr.rel (%p330) target = $region40
        $region39: #{tpu_custom_call.1} parent=27 // pred_region
          %v333 = vld [vmem:[#allocation7] sm:$0xff]
          %v334 = vld [vmem:[#allocation7 + $0x8] sm:$0xff]
          %v335 = vmul.f32 %v323, %v333
          %v336 = vmul.f32 %v324, %v334
          %v337 = vmul.f32 %v325, %v333
          %v338 = vmul.f32 %v326, %v334
          %v339 = vmul.f32 %v327, %v333
          %v340 = vmul.f32 %v328, %v334
          %341 = vst.msk [vmem:[%s199] sm:$0xff] %vm242, %v335
          %342 = vst.msk [vmem:[%s199 + $0x8] sm:$0xff] %vm242, %v336
          %343 = vst.msk [vmem:[%s199 + $0x10] sm:$0xff] %vm242, %v337
          %344 = vst.msk [vmem:[%s199 + $0x18] sm:$0xff] %vm242, %v338
          %345 = vst.msk [vmem:[%s199 + $0x20] sm:$0xff] %vm242, %v339
          %346 = vst.msk [vmem:[%s199 + $0x28] sm:$0xff] %vm242, %v340
        $region40: #{tpu_custom_call.1} parent=27 // pred_fallthru
          _
        %p347 = scmp.ne.s32.totalorder %s30, 0
        // Predicated region
        $region41: #{tpu_custom_call.1} parent=27 // pred_check
          %p348 = pneg %p347
        $region42: #{tpu_custom_call.1} parent=27 // pred_check_branch
          %350 = sbr.rel (%p348) target = $region44
        $region43: #{tpu_custom_call.1} parent=27 // pred_region
          %351 = vst.msk [vmem:[%s199] sm:$0xff] %vm242, %v323
          %352 = vst.msk [vmem:[%s199 + $0x8] sm:$0xff] %vm242, %v324
          %353 = vst.msk [vmem:[%s199 + $0x10] sm:$0xff] %vm242, %v325
          %354 = vst.msk [vmem:[%s199 + $0x18] sm:$0xff] %vm242, %v326
          %355 = vst.msk [vmem:[%s199 + $0x20] sm:$0xff] %vm242, %v327
          %356 = vst.msk [vmem:[%s199 + $0x28] sm:$0xff] %vm242, %v328
        $region44: #{tpu_custom_call.1} parent=27 // pred_fallthru
          _
        %s357 = sand.u32 %s96, 1
        %s358 = scalar_lea.sflag [#allocation6], %s357
        %s359 = sand.u32 %s96, 1
        %s360 = smul.addr %s359, 48
        %s361 = scalar_lea.vmem [#allocation9], %s360
        // Predicated region
        $region45: #{tpu_custom_call.1} parent=27 // pred_check
          %p362 = pneg %p106
        $region46: #{tpu_custom_call.1} parent=27 // pred_check_branch
          %364 = sbr.rel (%p362) target = $region48
        $region47: #{tpu_custom_call.1} parent=27 // pred_region
          %s366 = ssub.s32 768, 768
          %367 = vsyncadd %s358, %s366
          %s368 = smul.addr %s30, 6
          %s369 = smul.addr %s29, 18
          %s370 = sadd.s32 %s368, %s369
          %s371 = smul.addr %s370, 128
          %s372 = scalar_lea.hbm %s3, %s371
          %s373 = sshll.u32 %s361, 4
          %s374 = int_to_ptr.vmem [resolvable:$true] %s373
          %379 = dma.vmem_to_hbm [thread:$0]  %s374, 768, %s372, %s358, 128, 128, 8
        $region48: #{tpu_custom_call.1} parent=27 // pred_fallthru
          _
      $region28: #{tpu_custom_call.1} parent=5 // pred_fallthru
        _
      %p380 = scmp.le.s32.totalorder 2, %s20
      // Predicated region
      $region49: #{tpu_custom_call.1} parent=5 // pred_check
        %p381 = pneg %p380
      $region50: #{tpu_custom_call.1} parent=5 // pred_check_branch
        %383 = sbr.rel (%p381) target = $region52
      $region51: #{tpu_custom_call.1} parent=5 // pred_region
        %s384 = ssub.s32 %s20, 2
        // Predicated region
        $region53: #{tpu_custom_call.1} parent=51 // pred_check
          %p385 = pneg %p112
        $region54: #{tpu_custom_call.1} parent=51 // pred_check_branch
          %387 = sbr.rel (%p385) target = $region56
        $region55: #{tpu_custom_call.1} parent=51 // pred_region
          %s388 = sand.u32 %s97, 1
          %s389 = scalar_lea.sflag [#allocation6], %s388
          %s390 = sand.u32 %s97, 1
          %s391 = smul.addr %s390, 48
          %s392 = scalar_lea.vmem [#allocation9], %s391
          %393 = dma.done %s389, 768
        $region56: #{tpu_custom_call.1} parent=51 // pred_fallthru
          _
      $region52: #{tpu_custom_call.1} parent=5 // pred_fallthru
        _
    $region6: #{tpu_custom_call.1} parent=1 // loop_footer
      %s24 = sadd.s32 1, %s20
    $region7: #{tpu_custom_call.1} parent=1 // loop_footer_branch
      %19 = sbr.rel target = $region3
    $region8: #{tpu_custom_call.1} parent=1 // loop_exit
      _
    %394 = vsyncpa [#allocation5], 1
    %s395 = scalar_lea.sflag [#allocation5], 1
    %396 = vsyncpa %s395, 1
    %397 = vsyncpa [#allocation8], 1
    %398 = vsyncpa [#allocation6], 1
    %s399 = scalar_lea.sflag [#allocation6], 1
    %400 = vsyncpa %s399, 1

</llo_original>
